<compile_context>
chip_gen: v5e
topology: v5e:2x2
jax: 0.10.0
libtpu: 0.0.40
codegen_flags: <defaults>
</compile_context>

<pallas_src>
import functools
import math

import jax
import jax.numpy as jnp
from jax.experimental import pallas as pl
from jax.experimental.pallas import tpu as pltpu


_LANES = 128
_KF_CAP = 512          # cap on the folded contraction length
_MIB = 1024 * 1024


def _round_up(x: int, n: int) -> int:
    return ((x + n - 1) // n) * n


def _round_down(x: int, n: int) -> int:
    return (x // n) * n


def _cdiv(a: int, b: int) -> int:
    return (a + b - 1) // b


def _vmem_capacity_bytes(default: int = 64 * _MIB) -> int:
    """Physical VMEM per TensorCore; conservative (v7x-sized) fallback."""
    try:
        info = pltpu.get_tpu_info()
        return int(getattr(info, "vmem_capacity_bytes", default))
    except Exception:   # query unavailable -> assume the tightest (v7x) budget
        return default


def _wetdry_kernel(x_ref, w_ref, b_ref, o_ref, *, precision):
    # x_ref: (tile_m, kf)   VMEM  lane-dense folded activations (streamed)
    # w_ref: (kf, fold)     VMEM  block-diagonal folded weight (resident)
    # b_ref: (1, 1)         SMEM  scalar bias
    # o_ref: (tile_m, fold) VMEM
    y = jnp.dot(x_ref[...], w_ref[...],
                preferred_element_type=jnp.float32, precision=precision)
    o_ref[...] = (y + b_ref[0, 0]).astype(o_ref.dtype)


def wet_dry_head(x, weight, bias, *, precision=None):
    """
    x:      [Nb, Ns, Nf] float32 or bfloat16
    weight: [1, Nf] or [Nf]      (PyTorch nn.Linear layout)
    bias:   [1]
    returns [Nb, Ns, 1] float32  (linear only; the module's Sigmoid is unused
                                  in the reference forward and is omitted)
    precision: optional jax.lax.Precision for exact parity with f32 GEMV.
    """
    nb, ns, nf = x.shape
    m = nb * ns

    # Stream bf16 activations as bf16 (halves HBM traffic); everything else f32.
    in_dtype = jnp.bfloat16 if x.dtype == jnp.bfloat16 else jnp.float32
    isz = jnp.dtype(in_dtype).itemsize
    sub = (8 * 4) // isz                     # sublane granularity: 8 f32 / 16 bf16

    w_vec = jnp.asarray(weight, dtype=jnp.float32).reshape(-1)
    assert w_vec.shape == (nf,), f"weight must have {nf} elements, got {w_vec.shape}"
    b2d = jnp.asarray(bias, dtype=jnp.float32).reshape(1, 1)

    # Generalized fold: K = lcm(Nf, 128) (capped) keeps loads lane-dense for
    # any Nf whose folded row stays <= _KF_CAP wide; otherwise fall back.
    fold = _LANES // math.gcd(nf, _LANES)
    if fold * nf > _KF_CAP:
        fold = 1
    kf = fold * nf

    # Block-diagonal folded weight: W[j*nf + f, k] = w[f] if j == k else 0,
    # so (x_folded @ W)[r, k] = dot(x_row[r*fold + k, :], w).
    w_fold = (jnp.eye(fold, dtype=jnp.float32)[:, None, :]
              * w_vec[None, :, None]).reshape(kf, fold).astype(in_dtype)

    # Pad rows only up to a multiple of sub*fold (tiny); the trailing partial
    # grid block (if any) is handled by Pallas' boundary-block clamping.
    m_folded = _cdiv(m, fold)
    m_folded_pad = _round_up(m_folded, sub)
    rows_pad = m_folded_pad * fold

    x2d = x.reshape(m, nf)
    if x2d.dtype != in_dtype:
        x2d = x2d.astype(in_dtype)
    if rows_pad != m:
        x2d = jnp.pad(x2d, ((0, rows_pad - m), (0, 0)))
    x_folded = x2d.reshape(m_folded_pad, kf)

    # ---- Generation-aware tiling -------------------------------------------
    vmem_cap = _vmem_capacity_bytes()
    if vmem_cap <= 80 * _MIB:
        # v7x-class: 64 MiB VMEM / TC, 2 TCs. Keep a headroom'd budget and make
        # the grid an even count >= 2 so the "parallel" axis uses both cores.
        tile_budget = 32 * _MIB
        vmem_limit = 40 * _MIB
        force_two_steps = True
    else:
        # v5e / v6e: 128 MiB VMEM -> bigger tiles to amortize the ~0.35 us
        # fixed per-step overhead of this single-stream, HBM-bound kernel.
        tile_budget = 56 * _MIB
        vmem_limit = 64 * _MIB
        force_two_steps = False

    # Per folded row, double-buffered, accounting for lane padding (x128) of
    # both the input tile and the narrow (fold-wide) f32 output tile in VMEM.
    in_row_bytes = _round_up(kf, _LANES) * isz
    out_row_bytes = _round_up(fold, _LANES) * 4
    bytes_per_row = 2 * (in_row_bytes + out_row_bytes)
    tile_m_max = max(sub, _round_down(tile_budget // bytes_per_row, sub))

    n_steps = _cdiv(m_folded_pad, tile_m_max)
    if force_two_steps and m_folded_pad >= 2 * sub:
        n_steps = max(2, n_steps)
        if n_steps % 2:
            n_steps += 1
    tile_m = min(m_folded_pad, _round_up(_cdiv(m_folded_pad, n_steps), sub))
    grid = (_cdiv(m_folded_pad, tile_m),)

    out = pl.pallas_call(
        functools.partial(_wetdry_kernel, precision=precision),
        out_shape=jax.ShapeDtypeStruct((m_folded_pad, fold), jnp.float32),
        grid_spec=pltpu.PrefetchScalarGridSpec(
            num_scalar_prefetch=0,
            grid=grid,
            in_specs=[
                # x tile: pipelined / double-buffered along the row axis.
                pl.BlockSpec((tile_m, kf), lambda i: (i, 0)),
                # folded weight: constant block index -> stays resident.
                pl.BlockSpec((kf, fold), lambda i: (0, 0)),
                # scalar bias in SMEM (no per-step VMEM DMA / broadcast block).
                pl.BlockSpec(memory_space=pltpu.MemorySpace.SMEM),
            ],
            out_specs=pl.BlockSpec((tile_m, fold), lambda i: (i, 0)),
        ),
        compiler_params=pltpu.CompilerParams(
            # Row axis is embarrassingly parallel -> shards across 2 TCs on v7x.
            dimension_semantics=("parallel",),
            vmem_limit_bytes=vmem_limit,
        ),
    )(x_folded, w_fold, b2d)

    # (m_folded_pad, fold) row-major == original row order; the padded rows
    # only ever contain `bias` and are sliced away here (keep this slice!).
    y = out.reshape(rows_pad, 1)[:m]
    return y.reshape(nb, ns, 1)


if __name__ == "__main__":
    key = jax.random.PRNGKey(0)
    kx, kw, kb, kx2, kw3, kb3, kx3 = jax.random.split(key, 7)

    # 1) Small shapes consistent with the module: batch=2, seq=8, features=32.
    nb, ns, nf = 2, 8, 32
    x = jax.random.normal(kx, (nb, ns, nf), dtype=jnp.float32)
    bound = 1.0 / (nf ** 0.5)
    weight = jax.random.uniform(kw, (1, nf), minval=-bound, maxval=bound,
                                dtype=jnp.float32)
    bias = jax.random.uniform(kb, (1,), minval=-bound, maxval=bound,
                              dtype=jnp.float32)

    y = jax.block_until_ready(wet_dry_head(x, weight, bias))
    y_ref = x @ weight.T + bias  # [Nb, Ns, 1] — same math as PyTorch fc
    assert y.shape == (nb, ns, 1), y.shape
    assert jnp.allclose(y, y_ref, atol=1e-5, rtol=1e-5), "mismatch vs reference"

    # 2) Ragged M (not a multiple of fold / sublanes) exercises the small-pad
    #    path (pad only to 8*fold rows) and the row-order unfold.
    nb2, ns2 = 3, 37
    x2 = jax.random.normal(kx2, (nb2, ns2, nf), dtype=jnp.float32)
    y2 = jax.block_until_ready(wet_dry_head(x2, weight, bias))
    y2_ref = x2 @ weight.T + bias
    assert y2.shape == (nb2, ns2, 1), y2.shape
    assert jnp.allclose(y2, y2_ref, atol=1e-5, rtol=1e-5), "ragged mismatch"

    # 3) Nf that does NOT divide 128 (48 -> fold=8, K=384) exercises the
    #    generalized lcm fold that keeps loads lane-dense.
    nf3 = 48
    x3 = jax.random.normal(kx3, (2, 11, nf3), dtype=jnp.float32)
    bound3 = 1.0 / (nf3 ** 0.5)
    weight3 = jax.random.uniform(kw3, (1, nf3), minval=-bound3, maxval=bound3,
                                 dtype=jnp.float32)
    bias3 = jax.random.uniform(kb3, (1,), minval=-bound3, maxval=bound3,
                               dtype=jnp.float32)
    y3 = jax.block_until_ready(wet_dry_head(x3, weight3, bias3))
    y3_ref = x3 @ weight3.T + bias3
    assert y3.shape == (2, 11, 1), y3.shape
    assert jnp.allclose(y3, y3_ref, atol=1e-5, rtol=1e-5), "lcm-fold mismatch"

    # TODO(synk): the module's Sigmoid is never applied in forward(); it is
    # intentionally omitted here to match the reference output exactly.
    print("KERNEL_OK")
</pallas_src>

<mosaic_0001>
module attributes {stable_mosaic.version = 11 : i64} {
  func.func @_wetdry_kernel(%arg0: i32, %arg1: memref<8x128xf32, #tpu.memory_space<vmem>>, %arg2: memref<128x4xf32, #tpu.memory_space<vmem>>, %arg3: memref<1x1xf32, #tpu.memory_space<smem>>, %arg4: memref<8x4xf32, #tpu.memory_space<vmem>>) attributes {dimension_semantics = [#tpu.dimension_semantics<parallel>], iteration_bounds = array<i64: 1>, scalar_prefetch = 0 : i64, scratch_operands = 0 : i64, tpu.core_type = #tpu.core_type<tc>, window_params = [{transform_indices = @transform_0, window_bounds = array<i64: 8, 128>}, {pipeline_mode = #tpu.pipeline_mode<synchronous>, transform_indices = @transform_1, window_bounds = array<i64: 128, 4>}, {transform_indices = @transform_2, window_bounds = array<i64: 1, 1>}, {transform_indices = @transform_3, window_bounds = array<i64: 8, 4>}]} {
    %c0 = arith.constant 0 : index
    %c0_0 = arith.constant 0 : index
    %0 = vector.load %arg1[%c0, %c0_0] : memref<8x128xf32, #tpu.memory_space<vmem>>, vector<8x128xf32>
    %c0_1 = arith.constant 0 : index
    %c0_2 = arith.constant 0 : index
    %1 = vector.load %arg2[%c0_1, %c0_2] : memref<128x4xf32, #tpu.memory_space<vmem>>, vector<128x4xf32>
    %cst = arith.constant dense<0.000000e+00> : vector<8x4xf32>
    %2 = tpu.matmul %0, %1, %cst {dimension_numbers = #tpu.dot_dimension_numbers<[1], [0], [0], [1], [0, 0, 1, 1], [], []>} : vector<8x128xf32>, vector<128x4xf32>, vector<8x4xf32> -> vector<8x4xf32>
    %c0_3 = arith.constant 0 : index
    %c0_4 = arith.constant 0 : index
    %3 = memref.load %arg3[%c0_3, %c0_4] : memref<1x1xf32, #tpu.memory_space<smem>>
    %4 = vector.broadcast %3 : f32 to vector<8x4xf32>
    %5 = arith.addf %2, %4 : vector<8x4xf32>
    %c0_5 = arith.constant 0 : index
    %c0_6 = arith.constant 0 : index
    %6 = vector.load %arg4[%c0_5, %c0_6] : memref<8x4xf32, #tpu.memory_space<vmem>>, vector<8x4xf32>
    tpu.vector_store %arg4[%c0_5, %c0_6], %5 {strides = array<i32>} : memref<8x4xf32, #tpu.memory_space<vmem>>, vector<8x4xf32>,
    return
  }
  func.func @transform_0(%arg0: i32) -> (i32, i32) {
    %c0_i32 = arith.constant 0 : i32
    %c0_i32_0 = arith.constant 0 : i32
    return %arg0, %c0_i32 : i32, i32
  }
  func.func @transform_1(%arg0: i32) -> (i32, i32) {
    %c0_i32 = arith.constant 0 : i32
    %c0_i32_0 = arith.constant 0 : i32
    %c0_i32_1 = arith.constant 0 : i32
    return %c0_i32, %c0_i32_0 : i32, i32
  }
  func.func @transform_2(%arg0: i32) -> (i32, i32) {
    %c0_i32 = arith.constant 0 : i32
    %c0_i32_0 = arith.constant 0 : i32
    %c0_i32_1 = arith.constant 0 : i32
    return %c0_i32, %c0_i32_0 : i32, i32
  }
  func.func @transform_3(%arg0: i32) -> (i32, i32) {
    %c0_i32 = arith.constant 0 : i32
    %c0_i32_0 = arith.constant 0 : i32
    return %arg0, %c0_i32 : i32, i32
  }
}

</mosaic_0001>

<llo_original>
// kernel: tpu_custom_call.1
$region0: #{tpu_custom_call.1}
  #allocation0 [shape = 'u32[]', space=smem, size = 0x4, offset = 0x4, fixed_abs, tag = 'smem constant byte address 0x4 - core index']
  #allocation1 [shape = 'u32[72,128]{1,0:T(1,128)}', space=vmem, size = 0x9000, scoped, tag = 'internal scratch']
  #allocation2 [shape = 'f32[1,1]{1,0:T(1,128)S(6)}', space=smem, size = 0x200, scoped, tag = 'scoped memory for tpu_custom_call.1']
  %s0 = inlined_call_operand.vmem [shape: f32[8,128], index: 0, kind: input, shape index: {}]
  %s1 = inlined_call_operand.vmem [shape: f32[128,4], index: 1, kind: input, shape index: {}]
  %s2 = inlined_call_operand.<no memory space> [shape: f32[1,1], index: 2, kind: input, shape index: {}]
  %s3 = inlined_call_operand.vmem [shape: f32[8,4], index: 3, kind: output, shape index: {}]
  %s4 = sld [smem:[#allocation0]]
  $region22: #{tpu_custom_call.1} parent=0
    _
  %s6 = ssub.s32 1, %s4
  %s7 = scalar_select 0, %s6, %s4
  %8 = sst [smem:[#allocation2]] %s2
  // Predicated region
  $region2: #{tpu_custom_call.1} parent=0 // pred_check
    _
  $region3: #{tpu_custom_call.1} parent=0 // pred_check_branch
    %10 = sbr.rel (0) target = $region5
  $region4: #{tpu_custom_call.1} parent=0 // pred_region
    _
  $region5: #{tpu_custom_call.1} parent=0 // pred_fallthru
    _
  // Predicated region
  $region6: #{tpu_custom_call.1} parent=0 // pred_check
    _
  $region7: #{tpu_custom_call.1} parent=0 // pred_check_branch
    %12 = sbr.rel (0) target = $region9
  $region8: #{tpu_custom_call.1} parent=0 // pred_region
    _
  $region9: #{tpu_custom_call.1} parent=0 // pred_fallthru
    _
  // Predicated region
  $region10: #{tpu_custom_call.1} parent=0 // pred_check
    _
  $region11: #{tpu_custom_call.1} parent=0 // pred_check_branch
    %14 = sbr.rel (0) target = $region13
  $region12: #{tpu_custom_call.1} parent=0 // pred_region
    _
  $region13: #{tpu_custom_call.1} parent=0 // pred_fallthru
    _
  %v15 = vld [vmem:[%s0] sm:$0xff]
  %v16 = vld [vmem:[%s1] sm:$0xff]
  %v17 = vld [vmem:[%s1 + $0x8] sm:$0xff]
  %v18 = vld [vmem:[%s1 + $0x10] sm:$0xff]
  %v19 = vld [vmem:[%s1 + $0x18] sm:$0xff]
  %v20 = vld [vmem:[%s1 + $0x20] sm:$0xff]
  %v21 = vld [vmem:[%s1 + $0x28] sm:$0xff]
  %v22 = vld [vmem:[%s1 + $0x30] sm:$0xff]
  %v23 = vld [vmem:[%s1 + $0x38] sm:$0xff]
  %v24 = vld [vmem:[%s1 + $0x40] sm:$0xff]
  %v25 = vld [vmem:[%s1 + $0x48] sm:$0xff]
  %v26 = vld [vmem:[%s1 + $0x50] sm:$0xff]
  %v27 = vld [vmem:[%s1 + $0x58] sm:$0xff]
  %v28 = vld [vmem:[%s1 + $0x60] sm:$0xff]
  %v29 = vld [vmem:[%s1 + $0x68] sm:$0xff]
  %v30 = vld [vmem:[%s1 + $0x70] sm:$0xff]
  %v31 = vld [vmem:[%s1 + $0x78] sm:$0xff]
  %s32 = sld [smem:[#allocation2]]
  %v33 = vstv %s32
  %34 = vmatpush.msra.mxu0 %v31
  %35 = vmatpush.msra.mxu0 %v30
  %36 = vmatpush.msra.mxu0 %v29
  %37 = vmatpush.msra.mxu0 %v28
  %38 = vmatpush.msra.mxu0 %v27
  %39 = vmatpush.msra.mxu0 %v26
  %40 = vmatpush.msra.mxu0 %v25
  %41 = vmatpush.msra.mxu0 %v24
  %42 = vmatpush.msra.mxu0 %v23
  %43 = vmatpush.msra.mxu0 %v22
  %44 = vmatpush.msra.mxu0 %v21
  %45 = vmatpush.msra.mxu0 %v20
  %46 = vmatpush.msra.mxu0 %v19
  %47 = vmatpush.msra.mxu0 %v18
  %48 = vmatpush.msra.mxu0 %v17
  %49 = vmatpush.msra.mxu0 %v16
  %50 = vmatmul.f32.gmra.mxu0 %v15
  %v51 = vpop.f32.mrf.mxu0
  %v52 = vadd.f32 %v33, %v51
  %53 = vdwg.mxu0
  %vm54 = vcmask 31744
  %55 = vst.msk [vmem:[%s3] sm:$0xff] %vm54, %v52
  // Predicated region
  $region14: #{tpu_custom_call.1} parent=0 // pred_check
    _
  $region15: #{tpu_custom_call.1} parent=0 // pred_check_branch
    %57 = sbr.rel (0) target = $region17
  $region16: #{tpu_custom_call.1} parent=0 // pred_region
    _
  $region17: #{tpu_custom_call.1} parent=0 // pred_fallthru
    _
  // Predicated region
  $region18: #{tpu_custom_call.1} parent=0 // pred_check
    _
  $region19: #{tpu_custom_call.1} parent=0 // pred_check_branch
    %59 = sbr.rel (0) target = $region21
  $region20: #{tpu_custom_call.1} parent=0 // pred_region
    _
  $region21: #{tpu_custom_call.1} parent=0 // pred_fallthru
    _

</llo_original>
